<compile_context>
chip_gen: v5e
topology: v5e:2x2
jax: 0.10.0
libtpu: 0.0.40
codegen_flags: <defaults>
</compile_context>

<pallas_src>
import jax
import jax.numpy as jnp
from jax.experimental import pallas as pl
from jax.experimental.pallas import tpu as pltpu


def _round_up(x, m):
    return ((x + m - 1) // m) * m


def feedforward_kernel(xT_ref, w1_ref, b1_ref, wih_ref, brnn_ref,
                       w2_ref, b2_ref, oT_ref):
    xT = xT_ref[...]                                                  # [In, TB]

    # fc1 (+ eval-mode dropout = identity) + ReLU
    h = jnp.dot(w1_ref[...], xT, preferred_element_type=jnp.float32) + b1_ref[...]
    h = jnp.maximum(h, 0.0)                                           # [H, TB]

    # RNNCell with h0 = 0: tanh(W_ih @ h + (b_ih + b_hh)), then the module's Tanh.
    h = jnp.tanh(jnp.dot(wih_ref[...], h,
                         preferred_element_type=jnp.float32) + brnn_ref[...])
    h = jnp.tanh(h)

    # eval-mode dropout = identity, fc2, sigmoid
    logits = jnp.dot(w2_ref[...], h,
                     preferred_element_type=jnp.float32) + b2_ref[...]  # [2, TB]
    oT_ref[...] = jax.nn.sigmoid(logits)


def feedforward(x, params, *, tile_b=512):
    """x: [B, input_size] float32.  Returns [B, 2] float32 probabilities."""
    B, in_dim = x.shape
    hidden = params["w1"].shape[0]

    # Lane-aligned batch tile; pad the batch so the grid divides it evenly.
    tb = min(tile_b, _round_up(max(B, 1), 128))
    bp = _round_up(B, tb)

    xT = jnp.transpose(x)                            # [In, B]  (layout plumbing)
    if bp != B:
        xT = jnp.pad(xT, ((0, 0), (0, bp - B)))

    # NOTE: on v6e/v7x, casting xT / w1 / wih to bfloat16 here (keeping
    # preferred_element_type=f32 in the kernel) halves x HBM traffic and feeds
    # the MXU natively; kept f32 in this demo for bit-accurate checking and
    # because v5e has no bf16 VPU/EUP path.

    outT = pl.pallas_call(
        feedforward_kernel,
        out_shape=jax.ShapeDtypeStruct((2, bp), jnp.float32),
        grid=(bp // tb,),
        in_specs=[
            pl.BlockSpec((in_dim, tb), lambda i: (0, i)),      # x tile (streamed)
            pl.BlockSpec((hidden, in_dim), lambda i: (0, 0)),  # w1    (resident)
            pl.BlockSpec((hidden, 1), lambda i: (0, 0)),       # b1
            pl.BlockSpec((hidden, hidden), lambda i: (0, 0)),  # w_ih
            pl.BlockSpec((hidden, 1), lambda i: (0, 0)),       # b_ih + b_hh
            pl.BlockSpec((2, hidden), lambda i: (0, 0)),       # w2
            pl.BlockSpec((2, 1), lambda i: (0, 0)),            # b2
        ],
        out_specs=pl.BlockSpec((2, tb), lambda i: (0, i)),
        compiler_params=pltpu.CompilerParams(
            dimension_semantics=("parallel",)),
    )(xT, params["w1"], params["b1"], params["wih"], params["brnn"],
      params["w2"], params["b2"])

    return jnp.transpose(outT)[:B]                   # [B, 2]


def init_params(key, input_size, hidden_size):
    """PyTorch-style uniform(-1/sqrt(fan_in), 1/sqrt(fan_in)) init.  Weights are
    kept in their natural [out, in] orientation for the feature-major W @ X kernel."""
    ks = jax.random.split(key, 7)

    def unif(k, shape, fan_in):
        bound = 1.0 / jnp.sqrt(jnp.float32(fan_in))
        return jax.random.uniform(k, shape, jnp.float32, -bound, bound)

    # fc1: Linear(input_size, hidden_size)
    w1 = unif(ks[0], (hidden_size, input_size), input_size)
    b1 = unif(ks[1], (hidden_size, 1), input_size)
    # rnn1: RNNCell(hidden, hidden);  W_hh never used (h0 == 0), biases folded.
    wih = unif(ks[2], (hidden_size, hidden_size), hidden_size)
    bih = unif(ks[3], (hidden_size, 1), hidden_size)
    bhh = unif(ks[4], (hidden_size, 1), hidden_size)
    # fc2: Linear(hidden_size, 2)
    w2 = unif(ks[5], (2, hidden_size), hidden_size)
    b2 = unif(ks[6], (2, 1), hidden_size)

    return dict(w1=w1, b1=b1, wih=wih, brnn=bih + bhh, w2=w2, b2=b2)


def feedforward_ref(x, p):
    """Pure-JAX reference for correctness checking."""
    fc1 = x @ p["w1"].T + p["b1"][:, 0]
    relu1 = jnp.maximum(fc1, 0.0)
    rnn1 = jnp.tanh(relu1 @ p["wih"].T + p["brnn"][:, 0])
    tanh1 = jnp.tanh(rnn1)
    return jax.nn.sigmoid(tanh1 @ p["w2"].T + p["b2"][:, 0])


if __name__ == "__main__":
    # TODO(synk): dropout layers are treated as eval-mode identity (no RNG mask).
    key = jax.random.PRNGKey(0)
    k_param, k_x1, k_x2 = jax.random.split(key, 3)

    batch, input_size, hidden_size = 8, 16, 32
    params = init_params(k_param, input_size, hidden_size)

    # Small batch (single 128-wide tile after padding).
    x = jax.random.normal(k_x1, (batch, input_size), jnp.float32)
    out = jax.block_until_ready(feedforward(x, params))
    assert out.shape == (batch, 2)
    assert jnp.allclose(out, feedforward_ref(x, params), atol=1e-5, rtol=1e-5)

    # Ragged multi-tile batch (exercises the grid + padding path).
    x2 = jax.random.normal(k_x2, (300, input_size), jnp.float32)
    out2 = jax.block_until_ready(feedforward(x2, params, tile_b=128))
    assert out2.shape == (300, 2)
    assert jnp.allclose(out2, feedforward_ref(x2, params), atol=1e-5, rtol=1e-5)

    print("KERNEL_OK")
</pallas_src>

<mosaic_0001>
module attributes {stable_mosaic.version = 11 : i64} {
  func.func @feedforward_kernel(%arg0: i32, %arg1: memref<16x128xf32, #tpu.memory_space<vmem>>, %arg2: memref<32x16xf32, #tpu.memory_space<vmem>>, %arg3: memref<32x1xf32, #tpu.memory_space<vmem>>, %arg4: memref<32x32xf32, #tpu.memory_space<vmem>>, %arg5: memref<32x1xf32, #tpu.memory_space<vmem>>, %arg6: memref<2x32xf32, #tpu.memory_space<vmem>>, %arg7: memref<2x1xf32, #tpu.memory_space<vmem>>, %arg8: memref<2x128xf32, #tpu.memory_space<vmem>>) attributes {dimension_semantics = [#tpu.dimension_semantics<parallel>], iteration_bounds = array<i64: 1>, scalar_prefetch = 0 : i64, scratch_operands = 0 : i64, tpu.core_type = #tpu.core_type<tc>, window_params = [{transform_indices = @transform_0, window_bounds = array<i64: 16, 128>}, {pipeline_mode = #tpu.pipeline_mode<synchronous>, transform_indices = @transform_1, window_bounds = array<i64: 32, 16>}, {pipeline_mode = #tpu.pipeline_mode<synchronous>, transform_indices = @transform_2, window_bounds = array<i64: 32, 1>}, {pipeline_mode = #tpu.pipeline_mode<synchronous>, transform_indices = @transform_3, window_bounds = array<i64: 32, 32>}, {pipeline_mode = #tpu.pipeline_mode<synchronous>, transform_indices = @transform_4, window_bounds = array<i64: 32, 1>}, {pipeline_mode = #tpu.pipeline_mode<synchronous>, transform_indices = @transform_5, window_bounds = array<i64: 2, 32>}, {pipeline_mode = #tpu.pipeline_mode<synchronous>, transform_indices = @transform_6, window_bounds = array<i64: 2, 1>}, {transform_indices = @transform_7, window_bounds = array<i64: 2, 128>}]} {
    %c0 = arith.constant 0 : index
    %c0_0 = arith.constant 0 : index
    %0 = vector.load %arg1[%c0, %c0_0] : memref<16x128xf32, #tpu.memory_space<vmem>>, vector<16x128xf32>
    %c0_1 = arith.constant 0 : index
    %c0_2 = arith.constant 0 : index
    %1 = vector.load %arg2[%c0_1, %c0_2] : memref<32x16xf32, #tpu.memory_space<vmem>>, vector<32x16xf32>
    %cst = arith.constant dense<0.000000e+00> : vector<32x128xf32>
    %2 = tpu.matmul %1, %0, %cst {dimension_numbers = #tpu.dot_dimension_numbers<[1], [0], [0], [1], [0, 0, 1, 1], [], []>} : vector<32x16xf32>, vector<16x128xf32>, vector<32x128xf32> -> vector<32x128xf32>
    %c0_3 = arith.constant 0 : index
    %c0_4 = arith.constant 0 : index
    %3 = vector.load %arg3[%c0_3, %c0_4] : memref<32x1xf32, #tpu.memory_space<vmem>>, vector<32x1xf32>
    %4 = vector.broadcast %3 : vector<32x1xf32> to vector<32x128xf32>
    %5 = arith.addf %2, %4 : vector<32x128xf32>
    %cst_5 = arith.constant 0.000000e+00 : f32
    %6 = vector.broadcast %cst_5 : f32 to vector<32x128xf32>
    %7 = arith.maximumf %5, %6 : vector<32x128xf32>
    %c0_6 = arith.constant 0 : index
    %c0_7 = arith.constant 0 : index
    %8 = vector.load %arg4[%c0_6, %c0_7] : memref<32x32xf32, #tpu.memory_space<vmem>>, vector<32x32xf32>
    %cst_8 = arith.constant dense<0.000000e+00> : vector<32x128xf32>
    %9 = tpu.matmul %8, %7, %cst_8 {dimension_numbers = #tpu.dot_dimension_numbers<[1], [0], [0], [1], [0, 0, 1, 1], [], []>} : vector<32x32xf32>, vector<32x128xf32>, vector<32x128xf32> -> vector<32x128xf32>
    %c0_9 = arith.constant 0 : index
    %c0_10 = arith.constant 0 : index
    %10 = vector.load %arg5[%c0_9, %c0_10] : memref<32x1xf32, #tpu.memory_space<vmem>>, vector<32x1xf32>
    %11 = vector.broadcast %10 : vector<32x1xf32> to vector<32x128xf32>
    %12 = arith.addf %9, %11 : vector<32x128xf32>
    %13 = math.tanh %12 : vector<32x128xf32>
    %14 = math.tanh %13 : vector<32x128xf32>
    %c0_11 = arith.constant 0 : index
    %c0_12 = arith.constant 0 : index
    %15 = vector.load %arg6[%c0_11, %c0_12] : memref<2x32xf32, #tpu.memory_space<vmem>>, vector<2x32xf32>
    %cst_13 = arith.constant dense<0.000000e+00> : vector<2x128xf32>
    %16 = tpu.matmul %15, %14, %cst_13 {dimension_numbers = #tpu.dot_dimension_numbers<[1], [0], [0], [1], [0, 0, 1, 1], [], []>} : vector<2x32xf32>, vector<32x128xf32>, vector<2x128xf32> -> vector<2x128xf32>
    %c0_14 = arith.constant 0 : index
    %c0_15 = arith.constant 0 : index
    %17 = vector.load %arg7[%c0_14, %c0_15] : memref<2x1xf32, #tpu.memory_space<vmem>>, vector<2x1xf32>
    %18 = vector.broadcast %17 : vector<2x1xf32> to vector<2x128xf32>
    %19 = arith.addf %16, %18 : vector<2x128xf32>
    %20 = arith.negf %19 : vector<2x128xf32>
    %21 = math.exp %20 : vector<2x128xf32>
    %cst_16 = arith.constant 1.000000e+00 : f32
    %22 = vector.broadcast %cst_16 : f32 to vector<2x128xf32>
    %23 = arith.addf %22, %21 : vector<2x128xf32>
    %24 = arith.divf %22, %23 : vector<2x128xf32>
    %c0_17 = arith.constant 0 : index
    %c0_18 = arith.constant 0 : index
    %25 = vector.load %arg8[%c0_17, %c0_18] : memref<2x128xf32, #tpu.memory_space<vmem>>, vector<2x128xf32>
    tpu.vector_store %arg8[%c0_17, %c0_18], %24 {strides = array<i32>} : memref<2x128xf32, #tpu.memory_space<vmem>>, vector<2x128xf32>,
    return
  }
  func.func @transform_0(%arg0: i32) -> (i32, i32) {
    %c0_i32 = arith.constant 0 : i32
    %c0_i32_0 = arith.constant 0 : i32
    return %c0_i32, %arg0 : i32, i32
  }
  func.func @transform_1(%arg0: i32) -> (i32, i32) {
    %c0_i32 = arith.constant 0 : i32
    %c0_i32_0 = arith.constant 0 : i32
    %c0_i32_1 = arith.constant 0 : i32
    return %c0_i32, %c0_i32_0 : i32, i32
  }
  func.func @transform_2(%arg0: i32) -> (i32, i32) {
    %c0_i32 = arith.constant 0 : i32
    %c0_i32_0 = arith.constant 0 : i32
    %c0_i32_1 = arith.constant 0 : i32
    return %c0_i32, %c0_i32_0 : i32, i32
  }
  func.func @transform_3(%arg0: i32) -> (i32, i32) {
    %c0_i32 = arith.constant 0 : i32
    %c0_i32_0 = arith.constant 0 : i32
    %c0_i32_1 = arith.constant 0 : i32
    return %c0_i32, %c0_i32_0 : i32, i32
  }
  func.func @transform_4(%arg0: i32) -> (i32, i32) {
    %c0_i32 = arith.constant 0 : i32
    %c0_i32_0 = arith.constant 0 : i32
    %c0_i32_1 = arith.constant 0 : i32
    return %c0_i32, %c0_i32_0 : i32, i32
  }
  func.func @transform_5(%arg0: i32) -> (i32, i32) {
    %c0_i32 = arith.constant 0 : i32
    %c0_i32_0 = arith.constant 0 : i32
    %c0_i32_1 = arith.constant 0 : i32
    return %c0_i32, %c0_i32_0 : i32, i32
  }
  func.func @transform_6(%arg0: i32) -> (i32, i32) {
    %c0_i32 = arith.constant 0 : i32
    %c0_i32_0 = arith.constant 0 : i32
    %c0_i32_1 = arith.constant 0 : i32
    return %c0_i32, %c0_i32_0 : i32, i32
  }
  func.func @transform_7(%arg0: i32) -> (i32, i32) {
    %c0_i32 = arith.constant 0 : i32
    %c0_i32_0 = arith.constant 0 : i32
    return %c0_i32, %arg0 : i32, i32
  }
}

</mosaic_0001>

<llo_original>
// kernel: tpu_custom_call.1
$region0: #{tpu_custom_call.1}
  #allocation0 [shape = 'u32[]', space=smem, size = 0x4, offset = 0x4, fixed_abs, tag = 'smem constant byte address 0x4 - core index']
  #allocation1 [shape = 'u32[72,128]{1,0:T(1,128)}', space=vmem, size = 0x9000, scoped, tag = 'internal scratch']
  %s0 = inlined_call_operand.vmem [shape: f32[16,128], index: 0, kind: input, shape index: {}]
  %s1 = inlined_call_operand.vmem [shape: f32[32,16], index: 1, kind: input, shape index: {}]
  %s2 = inlined_call_operand.vmem [shape: f32[32,1], index: 2, kind: input, shape index: {}]
  %s3 = inlined_call_operand.vmem [shape: f32[32,32], index: 3, kind: input, shape index: {}]
  %s4 = inlined_call_operand.vmem [shape: f32[32,1], index: 4, kind: input, shape index: {}]
  %s5 = inlined_call_operand.vmem [shape: f32[2,32], index: 5, kind: input, shape index: {}]
  %s6 = inlined_call_operand.vmem [shape: f32[2,1], index: 6, kind: input, shape index: {}]
  %s7 = inlined_call_operand.hbm [shape: f32[2,128], index: 7, kind: output, shape index: {}]
  %s8 = sld [smem:[#allocation0]]
  $region38: #{tpu_custom_call.1} parent=0
    _
  %s10 = ssub.s32 1, %s8
  %s11 = scalar_select 0, %s10, %s8
  $region1: #{tpu_custom_call.1} parent=0
    #allocation2 [shape = 'u8[1024]{0}', space=vmem, size = 0x400, scoped, tag = 'output window, operand 0, single buffered']
    #allocation3 [shape = 's32[1]{0}', space=sflag, size = 0x4, scoped, tag = 'scoped memory for tpu_custom_call.1']
    %12 = vsyncpa [#allocation3], 0
    // Predicated region
    $region2: #{tpu_custom_call.1} parent=1 // pred_check
      _
    $region3: #{tpu_custom_call.1} parent=1 // pred_check_branch
      %14 = sbr.rel (0) target = $region5
    $region4: #{tpu_custom_call.1} parent=1 // pred_region
      _
    $region5: #{tpu_custom_call.1} parent=1 // pred_fallthru
      _
    // Predicated region
    $region6: #{tpu_custom_call.1} parent=1 // pred_check
      _
    $region7: #{tpu_custom_call.1} parent=1 // pred_check_branch
      %16 = sbr.rel (0) target = $region9
    $region8: #{tpu_custom_call.1} parent=1 // pred_region
      _
    $region9: #{tpu_custom_call.1} parent=1 // pred_fallthru
      _
    // Predicated region
    $region10: #{tpu_custom_call.1} parent=1 // pred_check
      _
    $region11: #{tpu_custom_call.1} parent=1 // pred_check_branch
      %18 = sbr.rel (0) target = $region13
    $region12: #{tpu_custom_call.1} parent=1 // pred_region
      _
    $region13: #{tpu_custom_call.1} parent=1 // pred_fallthru
      _
    // Predicated region
    $region14: #{tpu_custom_call.1} parent=1 // pred_check
      _
    $region15: #{tpu_custom_call.1} parent=1 // pred_check_branch
      %20 = sbr.rel (0) target = $region17
    $region16: #{tpu_custom_call.1} parent=1 // pred_region
      _
    $region17: #{tpu_custom_call.1} parent=1 // pred_fallthru
      _
    // Predicated region
    $region18: #{tpu_custom_call.1} parent=1 // pred_check
      _
    $region19: #{tpu_custom_call.1} parent=1 // pred_check_branch
      %22 = sbr.rel (0) target = $region21
    $region20: #{tpu_custom_call.1} parent=1 // pred_region
      _
    $region21: #{tpu_custom_call.1} parent=1 // pred_fallthru
      _
    // Predicated region
    $region22: #{tpu_custom_call.1} parent=1 // pred_check
      _
    $region23: #{tpu_custom_call.1} parent=1 // pred_check_branch
      %24 = sbr.rel (0) target = $region25
    $region24: #{tpu_custom_call.1} parent=1 // pred_region
      _
    $region25: #{tpu_custom_call.1} parent=1 // pred_fallthru
      _
    // Predicated region
    $region26: #{tpu_custom_call.1} parent=1 // pred_check
      _
    $region27: #{tpu_custom_call.1} parent=1 // pred_check_branch
      %26 = sbr.rel (0) target = $region29
    $region28: #{tpu_custom_call.1} parent=1 // pred_region
      _
    $region29: #{tpu_custom_call.1} parent=1 // pred_fallthru
      _
    %v27 = vld [vmem:[%s0] sm:$0xff]
    %v28 = vld [vmem:[%s0 + $0x8] sm:$0xff]
    %v29 = vld [vmem:[%s1] sm:$0xff]
    %v30 = vld [vmem:[%s1 + $0x8] sm:$0xff]
    %v31 = vld [vmem:[%s1 + $0x10] sm:$0xff]
    %v32 = vld [vmem:[%s1 + $0x18] sm:$0xff]
    %v33 = vld [vmem:[%s2] sm:$0xff]
    %v34 = vld [vmem:[%s2 + $0x8] sm:$0xff]
    %v35 = vld [vmem:[%s2 + $0x10] sm:$0xff]
    %v36 = vld [vmem:[%s2 + $0x18] sm:$0xff]
    %38 = vset.pattern.permute.xlu0 0
    %39 = vperm.xlu0 %38, %v33
    %v40 = vpop.permute.xlu0 %39
    %43 = vset.pattern.permute.xlu0 0
    %44 = vperm.xlu0 %43, %v34
    %v45 = vpop.permute.xlu0 %44
    %48 = vset.pattern.permute.xlu0 0
    %49 = vperm.xlu0 %48, %v35
    %v50 = vpop.permute.xlu0 %49
    %53 = vset.pattern.permute.xlu0 0
    %54 = vperm.xlu0 %53, %v36
    %v55 = vpop.permute.xlu0 %54
    %vm57 = vcmask 130048
    %v59 = vsel %vm57, %v29, 0
    %v62 = vsel %vm57, %v30, 0
    %v65 = vsel %vm57, %v31, 0
    %v68 = vsel %vm57, %v32, 0
    %70 = vmatpush.msra.mxu0 0.0
    %71 = vmatpush.msra.mxu0 0.0
    %72 = vmatpush.msra.mxu0 0.0
    %73 = vmatpush.msra.mxu0 0.0
    %74 = vmatpush.msra.mxu0 0.0
    %75 = vmatpush.msra.mxu0 0.0
    %76 = vmatpush.msra.mxu0 0.0
    %77 = vmatpush.msra.mxu0 0.0
    %78 = vmatpush.msra.mxu0 0.0
    %79 = vmatpush.msra.mxu0 0.0
    %80 = vmatpush.msra.mxu0 0.0
    %81 = vmatpush.msra.mxu0 0.0
    %82 = vmatpush.msra.mxu0 0.0
    %83 = vmatpush.msra.mxu0 0.0
    %84 = vmatpush.msra.mxu0 %v28
    %85 = vmatpush.msra.mxu0 %v27
    %86 = vmatmul.f32.gmra.mxu0 %v59
    %v87 = vpop.f32.mrf.mxu0
    %v88 = vadd.f32 %v40, %v87
    %89 = vmatmul.f32.gmra.mxu0 %v62
    %v90 = vpop.f32.mrf.mxu0
    %v91 = vadd.f32 %v45, %v90
    %92 = vmatmul.f32.gmra.mxu0 %v65
    %v93 = vpop.f32.mrf.mxu0
    %v94 = vadd.f32 %v50, %v93
    %95 = vmatmul.f32.gmra.mxu0 %v68
    %v96 = vpop.f32.mrf.mxu0
    %v97 = vadd.f32 %v55, %v96
    %98 = vdwg.mxu0
    %v99 = vmax.f32 %v88, 0.0
    %v100 = vmax.f32 %v91, 0.0
    %v101 = vmax.f32 %v94, 0.0
    %v102 = vmax.f32 %v97, 0.0
    %v103 = vld [vmem:[%s3] sm:$0xff]
    %v104 = vld [vmem:[%s3 + $0x8] sm:$0xff]
    %v105 = vld [vmem:[%s3 + $0x10] sm:$0xff]
    %v106 = vld [vmem:[%s3 + $0x18] sm:$0xff]
    %v107 = vld [vmem:[%s4] sm:$0xff]
    %v108 = vld [vmem:[%s4 + $0x8] sm:$0xff]
    %v109 = vld [vmem:[%s4 + $0x10] sm:$0xff]
    %v110 = vld [vmem:[%s4 + $0x18] sm:$0xff]
    %112 = vset.pattern.permute.xlu0 0
    %113 = vperm.xlu0 %112, %v107
    %v114 = vpop.permute.xlu0 %113
    %117 = vset.pattern.permute.xlu0 0
    %118 = vperm.xlu0 %117, %v108
    %v119 = vpop.permute.xlu0 %118
    %122 = vset.pattern.permute.xlu0 0
    %123 = vperm.xlu0 %122, %v109
    %v124 = vpop.permute.xlu0 %123
    %127 = vset.pattern.permute.xlu0 0
    %128 = vperm.xlu0 %127, %v110
    %v129 = vpop.permute.xlu0 %128
    %vm131 = vcmask 261120
    %v133 = vsel %vm131, %v103, 0
    %v136 = vsel %vm131, %v104, 0
    %v139 = vsel %vm131, %v105, 0
    %v142 = vsel %vm131, %v106, 0
    %144 = vmatpush.msra.mxu0 0.0
    %145 = vmatpush.msra.mxu0 0.0
    %146 = vmatpush.msra.mxu0 0.0
    %147 = vmatpush.msra.mxu0 0.0
    %148 = vmatpush.msra.mxu0 0.0
    %149 = vmatpush.msra.mxu0 0.0
    %150 = vmatpush.msra.mxu0 0.0
    %151 = vmatpush.msra.mxu0 0.0
    %152 = vmatpush.msra.mxu0 0.0
    %153 = vmatpush.msra.mxu0 0.0
    %154 = vmatpush.msra.mxu0 0.0
    %155 = vmatpush.msra.mxu0 0.0
    %156 = vmatpush.msra.mxu0 %v102
    %157 = vmatpush.msra.mxu0 %v101
    %158 = vmatpush.msra.mxu0 %v100
    %159 = vmatpush.msra.mxu0 %v99
    %160 = vmatmul.f32.gmra.mxu0 %v133
    %v161 = vpop.f32.mrf.mxu0
    %v162 = vadd.f32 %v114, %v161
    %163 = vmatmul.f32.gmra.mxu0 %v136
    %v164 = vpop.f32.mrf.mxu0
    %v165 = vadd.f32 %v119, %v164
    %166 = vmatmul.f32.gmra.mxu0 %v139
    %v167 = vpop.f32.mrf.mxu0
    %v168 = vadd.f32 %v124, %v167
    %169 = vmatmul.f32.gmra.mxu0 %v142
    %v170 = vpop.f32.mrf.mxu0
    %v171 = vadd.f32 %v129, %v170
    %172 = vdwg.mxu0
    %v173 = vtanh.pop %v162
    %v174 = vtanh.pop %v165
    %v175 = vtanh.pop %v168
    %v176 = vtanh.pop %v171
    %v177 = vtanh.pop %v173
    %v178 = vtanh.pop %v174
    %v179 = vtanh.pop %v175
    %v180 = vtanh.pop %v176
    %v181 = vld [vmem:[%s5] sm:$0x3]
    %v182 = vld [vmem:[%s6] sm:$0x3]
    %184 = vset.pattern.permute.xlu0 0
    %185 = vperm.xlu0 %184, %v182
    %v186 = vpop.permute.xlu0 %185
    %v189 = vsel %vm131, %v181, 0
    %191 = vmatpush.msra.mxu0 0.0
    %192 = vmatpush.msra.mxu0 0.0
    %193 = vmatpush.msra.mxu0 0.0
    %194 = vmatpush.msra.mxu0 0.0
    %195 = vmatpush.msra.mxu0 0.0
    %196 = vmatpush.msra.mxu0 0.0
    %197 = vmatpush.msra.mxu0 0.0
    %198 = vmatpush.msra.mxu0 0.0
    %199 = vmatpush.msra.mxu0 0.0
    %200 = vmatpush.msra.mxu0 0.0
    %201 = vmatpush.msra.mxu0 0.0
    %202 = vmatpush.msra.mxu0 0.0
    %203 = vmatpush.msra.mxu0 %v180
    %204 = vmatpush.msra.mxu0 %v179
    %205 = vmatpush.msra.mxu0 %v178
    %206 = vmatpush.msra.mxu0 %v177
    %207 = vmatmul.f32.gmra.mxu0 %v189
    %v208 = vpop.f32.mrf.mxu0
    %v209 = vadd.f32 %v186, %v208
    %210 = vdwg.mxu0
    %v211 = vxor.u32 %v209, 2147483648
    %v212 = vmul.f32 %v211, 1.442695
    %v213 = vpow.pop %v212
    %v214 = vadd.f32 %v213, 1.0
    %v215 = vrcp.pop %v214
    %v216 = vmul.f32 %v214, %v215
    %v217 = vsub.f32 1.0, %v216
    %v218 = vmul.f32 %v215, %v217
    %v219 = vadd.f32 %v215, %v218
    %vm220 = vweird.f32 %v214
    %vm221 = vweird.f32 %v215
    %vm222 = vmor %vm220, %vm221
    %v223 = vsel %vm222, %v215, %v219
    %v224 = vand.u32 2147483647, %v214
    %vm225 = vcmp.eq.f32.partialorder %v224, 8.507059e+37
    %v226 = vand.u32 %v214, 2147483648
    %v227 = vor.u32 1.1754944e-38, %v226
    %v228 = vsel %vm225, %v227, %v223
    %v229 = vmul.f32 1.0, %v228
    %230 = vst [vmem:[#allocation2] sm:$0x3] %v229
    // Predicated region
    $region30: #{tpu_custom_call.1} parent=1 // pred_check
      _
    $region31: #{tpu_custom_call.1} parent=1 // pred_check_branch
      %232 = sbr.rel (0) target = $region33
    $region32: #{tpu_custom_call.1} parent=1 // pred_region
      %234 = vsyncadd [#allocation3], 0
      %s236 = sshll.u32 [#allocation2], 4
      %s237 = int_to_ptr.vmem [resolvable:$true] %s236
      %s238 = sshll.u32 %s7, 4
      %s239 = int_to_ptr.hbm [resolvable:$true] %s238
      %241 = dma.vmem_to_hbm [thread:$0]  %s237, 32, %s239, [#allocation3]
    $region33: #{tpu_custom_call.1} parent=1 // pred_fallthru
      _
    // Predicated region
    $region34: #{tpu_custom_call.1} parent=1 // pred_check
      _
    $region35: #{tpu_custom_call.1} parent=1 // pred_check_branch
      %243 = sbr.rel (0) target = $region37
    $region36: #{tpu_custom_call.1} parent=1 // pred_region
      %245 = dma.done [#allocation3], 32
    $region37: #{tpu_custom_call.1} parent=1 // pred_fallthru
      _
    %246 = vsyncpa [#allocation3], 1

</llo_original>
